<compile_context>
chip_gen: v5e
topology: v5e:2x2
jax: 0.10.0
libtpu: 0.0.40
codegen_flags: <defaults>
</compile_context>

<pallas_src>
import jax
import jax.numpy as jnp
from jax.experimental import pallas as pl
from jax.experimental.pallas import tpu as pltpu


def _round_up(x: int, m: int) -> int:
    return (x + m - 1) // m * m


# (per-buffer logits-tile byte cap, vmem_limit_bytes, default split count)
_GEN_CONFIG = {
    "v7x": (4 << 20, 48 << 20, 2),   # 64 MiB VMEM/TC, 2 TCs per chip
    "v6e": (8 << 20, 96 << 20, 1),   # 128 MiB VMEM, 1 TC
    "v5e": (4 << 20, 64 << 20, 1),   # 128 MiB VMEM (16 MiB scoped default), 1 TC
    "other": (4 << 20, 48 << 20, 1),
}


def _tpu_generation() -> str:
    try:
        kind = jax.devices()[0].device_kind.lower()
    except Exception:
        return "other"
    if "v7" in kind or "7x" in kind:
        return "v7x"
    if "v6" in kind:
        return "v6e"
    if "v5" in kind:
        return "v5e"
    return "other"


def _make_brier_kernel(n_rows: int, tile_n: int, tiles_per_split: int):
    def kernel(logits_ref, labels_ref, out_ref, acc_ref):
        s = pl.program_id(0)                       # split axis ("parallel")
        i = pl.program_id(1)                       # tile-within-split (reduction)

        @pl.when(i == 0)
        def _():
            acc_ref[...] = jnp.zeros_like(acc_ref)

        tn, c = logits_ref.shape
        start_row = (s * tiles_per_split + i) * tile_n

        def tile_contribution(mask_rows: bool):
            x = logits_ref[...].astype(jnp.float32)   # in-kernel cast (VPU)
            if mask_rows:
                row = jax.lax.broadcasted_iota(jnp.int32, (tn, 1), 0)
                valid = (start_row + row) < n_rows    # (tn, 1) bool
                # Keep exp() finite on padded/garbage rows.
                x = jnp.where(valid, x, 0.0)

            # Numerically-stable softmax over the class (lane) axis.
            m = jnp.max(x, axis=1, keepdims=True)              # XLU row max
            e = jnp.exp(x - m)                                 # EUP
            denom = jnp.sum(e, axis=1, keepdims=True)          # XLU row sum
            r = pl.reciprocal(denom, approx=True)              # EUP vrcp
            r = r * (2.0 - denom * r)                          # 1 NR step (per row)
            p = e * r

            # One-hot(labels) from an iota over the class axis.
            cls = jax.lax.broadcasted_iota(jnp.int32, (tn, c), 1)
            onehot = (cls == labels_ref[...]).astype(jnp.float32)
            d = onehot - p

            # Class-axis lane reduce on the XLU -> (tn, 1) per-row partials.
            row_sq = jnp.sum(d * d, axis=1, keepdims=True)
            if mask_rows:
                row_sq = jnp.where(valid, row_sq, 0.0)

            # Fold (tn, 1) -> (8, 1) with ~tn/8 vreg adds (not 1 add/element).
            acc_ref[...] += jnp.sum(row_sq.reshape(tn // 8, 8, 1), axis=0)

        is_full = start_row + tile_n <= n_rows
        is_empty = start_row >= n_rows
        is_partial = jnp.logical_and(jnp.logical_not(is_full),
                                     jnp.logical_not(is_empty))

        # Fast path: no masks at all for fully-valid tiles (the common case).
        @pl.when(is_full)
        def _():
            tile_contribution(False)

        # Boundary tile: masked path. Fully-padded split iterations run neither.
        @pl.when(is_partial)
        def _():
            tile_contribution(True)

        @pl.when(i == tiles_per_split - 1)
        def _():
            out_ref[...] = acc_ref[...]

    return kernel


def brier_loss(logits: jax.Array, labels: jax.Array, *,
               tile_n: int | None = None,
               num_splits: int | None = None) -> jax.Array:
    """logits: (N, C) float (f32/bf16); labels: (N,) int — scalar f32 loss."""
    n, c = logits.shape
    labels2d = labels.astype(jnp.int32).reshape(n, 1)
    itemsize = logits.dtype.itemsize

    gen = _tpu_generation()
    tile_bytes_cap, vmem_limit, gen_splits = _GEN_CONFIG[gen]

    # Sublane granularity: 16-bit dtypes pack 16 rows per vreg.
    sub = 16 if itemsize == 2 else 8

    # VMEM footprint per logits row while one tile is in flight:
    #   2x double-buffered logits block
    # + 2x double-buffered labels block (int32 (tn,1) pads to (tn,128) = 512 B/row)
    # + ~4 full-tile f32 temporaries forced by the softmax row-reduction barriers
    # + the (tn,1) f32 row-sum temporary (also lane-padded).
    bytes_per_row = 2 * c * itemsize + 2 * 512 + 4 * c * 4 + 512
    usable = max(4 << 20, vmem_limit - (12 << 20))   # headroom for compiler scratch
    rows_budget = usable // bytes_per_row
    rows_cap = tile_bytes_cap // max(1, c * itemsize)
    tn = min(rows_budget, rows_cap, _round_up(n, sub))
    if tile_n is not None:
        tn = min(tn, tile_n)
    tn = max(sub, (tn // sub) * sub)

    n_tiles = pl.cdiv(n, tn)
    splits = gen_splits if num_splits is None else num_splits
    splits = max(1, min(splits, n_tiles))            # 1 on single-TC chips
    tiles_per_split = pl.cdiv(n_tiles, splits)

    def in_map(s_idx, i_idx):
        # Clamp so padded split iterations never DMA out of bounds; the kernel
        # skips their compute entirely (is_empty branch).
        t = jnp.minimum(s_idx * tiles_per_split + i_idx, n_tiles - 1)
        return (t, 0)

    # NOTE(v7x): verify in a trace that the leading "parallel" axis shards
    # across both TensorCores; if not, switch it to pltpu.CORE_PARALLEL.
    partials = pl.pallas_call(
        _make_brier_kernel(n, tn, tiles_per_split),
        out_shape=jax.ShapeDtypeStruct((splits * 8, 1), jnp.float32),
        grid=(splits, tiles_per_split),
        in_specs=[
            pl.BlockSpec((tn, c), in_map),
            pl.BlockSpec((tn, 1), in_map),
        ],
        out_specs=pl.BlockSpec((8, 1), lambda s_idx, i_idx: (s_idx, 0)),
        scratch_shapes=[pltpu.VMEM((8, 1), jnp.float32)],
        compiler_params=pltpu.CompilerParams(
            dimension_semantics=("parallel", "arbitrary"),
            vmem_limit_bytes=vmem_limit),
        cost_estimate=pl.CostEstimate(
            flops=10 * n * c,
            transcendentals=n * c,
            bytes_accessed=n * c * itemsize + n * 4 + splits * 8 * 4),
    )(logits, labels2d)

    # Single tiny reduce + mean outside the kernel; divide by the true N*C.
    return jnp.sum(partials) / (n * c)


def _brier_loss_ref(logits, labels):
    p = jax.nn.softmax(logits.astype(jnp.float32), axis=1)
    onehot = jax.nn.one_hot(labels, logits.shape[1], dtype=jnp.float32)
    d = onehot - p
    return jnp.mean(d * d)


if __name__ == "__main__":
    key = jax.random.PRNGKey(0)
    k1, k2, k3, k4 = jax.random.split(key, 4)

    # Case 1: small f32 problem (matches the PyTorch module's (N, C) logits).
    N, C = 8, 32
    logits = jax.random.normal(k1, (N, C), dtype=jnp.float32)
    labels = jax.random.randint(k2, (N,), 0, C, dtype=jnp.int32)
    loss = brier_loss(logits, labels)
    jax.block_until_ready(loss)
    ref = _brier_loss_ref(logits, labels)
    assert jnp.allclose(loss, ref, rtol=1e-5, atol=1e-6), (loss, ref)

    # Case 2: ragged batch (N % tile != 0), multi-tile, masked-boundary path.
    N2, C2 = 300, 100
    logits2 = jax.random.normal(k3, (N2, C2), dtype=jnp.float32)
    labels2 = jax.random.randint(k4, (N2,), 0, C2, dtype=jnp.int32)
    loss2 = brier_loss(logits2, labels2, tile_n=64)
    jax.block_until_ready(loss2)
    ref2 = _brier_loss_ref(logits2, labels2)
    assert jnp.allclose(loss2, ref2, rtol=1e-5, atol=1e-6), (loss2, ref2)

    # Case 3: bf16 logits — cast happens inside the kernel (half the HBM bytes).
    logits2_bf16 = logits2.astype(jnp.bfloat16)
    loss3 = brier_loss(logits2_bf16, labels2, tile_n=64)
    jax.block_until_ready(loss3)
    ref3 = _brier_loss_ref(logits2_bf16.astype(jnp.float32), labels2)
    assert jnp.allclose(loss3, ref3, rtol=1e-4, atol=1e-5), (loss3, ref3)

    print("KERNEL_OK")
</pallas_src>

<mosaic_0001>
module attributes {stable_mosaic.version = 11 : i64} {
  func.func @kernel(%arg0: i32, %arg1: i32, %arg2: memref<8x32xf32, #tpu.memory_space<vmem>>, %arg3: memref<8x1xi32, #tpu.memory_space<vmem>>, %arg4: memref<8x1xf32, #tpu.memory_space<vmem>>, %arg5: memref<8x1xf32, #tpu.memory_space<vmem>>) attributes {dimension_semantics = [#tpu.dimension_semantics<parallel>, #tpu.dimension_semantics<arbitrary>], iteration_bounds = array<i64: 1, 1>, scalar_prefetch = 0 : i64, scratch_operands = 1 : i64, tpu.core_type = #tpu.core_type<tc>, window_params = [{transform_indices = @transform_0, window_bounds = array<i64: 8, 32>}, {transform_indices = @transform_1, window_bounds = array<i64: 8, 1>}, {transform_indices = @transform_2, window_bounds = array<i64: 8, 1>}]} {
    %c0_i32 = arith.constant 0 : i32
    %0 = arith.cmpi eq, %arg1, %c0_i32 : i32
    %1 = arith.extui %0 : i1 to i32
    %c0_i32_0 = arith.constant 0 : i32
    %2 = arith.cmpi ne, %1, %c0_i32_0 : i32
    scf.if %2 {
      %cst = arith.constant 0.000000e+00 : f32
      %19 = vector.broadcast %cst : f32 to vector<8x1xf32>
      %c0 = arith.constant 0 : index
      %c0_9 = arith.constant 0 : index
      %20 = vector.load %arg5[%c0, %c0_9] : memref<8x1xf32, #tpu.memory_space<vmem>>, vector<8x1xf32>
      tpu.vector_store %arg5[%c0, %c0_9], %19 {strides = array<i32>} : memref<8x1xf32, #tpu.memory_space<vmem>>, vector<8x1xf32>,
    } else {
    }
    %c1_i32 = arith.constant 1 : i32
    %3 = arith.muli %arg0, %c1_i32 : i32
    %4 = arith.addi %3, %arg1 : i32
    %c8_i32 = arith.constant 8 : i32
    %5 = arith.muli %4, %c8_i32 : i32
    %c8_i32_1 = arith.constant 8 : i32
    %6 = arith.addi %5, %c8_i32_1 : i32
    %c8_i32_2 = arith.constant 8 : i32
    %7 = arith.cmpi sle, %6, %c8_i32_2 : i32
    %c8_i32_3 = arith.constant 8 : i32
    %8 = arith.cmpi sge, %5, %c8_i32_3 : i32
    %true = arith.constant true
    %9 = arith.xori %7, %true : i1
    %true_4 = arith.constant true
    %10 = arith.xori %8, %true_4 : i1
    %11 = arith.andi %9, %10 : i1
    %12 = arith.extui %7 : i1 to i32
    %c0_i32_5 = arith.constant 0 : i32
    %13 = arith.cmpi ne, %12, %c0_i32_5 : i32
    scf.if %13 {
      %c0 = arith.constant 0 : index
      %c0_9 = arith.constant 0 : index
      %19 = vector.load %arg2[%c0, %c0_9] : memref<8x32xf32, #tpu.memory_space<vmem>>, vector<8x32xf32>
      %cst = arith.constant dense<0xFF800000> : vector<8xf32>
      %20 = vector.multi_reduction <maximumf>, %19, %cst [1] : vector<8x32xf32> to vector<8xf32>
      %21 = vector.shape_cast %20 : vector<8xf32> to vector<8x1xf32>
      %22 = vector.broadcast %21 : vector<8x1xf32> to vector<8x32xf32>
      %23 = arith.subf %19, %22 : vector<8x32xf32>
      %24 = math.exp %23 : vector<8x32xf32>
      %cst_10 = arith.constant dense<0.000000e+00> : vector<8xf32>
      %25 = vector.multi_reduction <add>, %24, %cst_10 [1] : vector<8x32xf32> to vector<8xf32>
      %26 = vector.shape_cast %25 : vector<8xf32> to vector<8x1xf32>
      %27 = tpu.reciprocal %26 {approx = true} : vector<8x1xf32> -> vector<8x1xf32>
      %28 = arith.mulf %26, %27 : vector<8x1xf32>
      %cst_11 = arith.constant 2.000000e+00 : f32
      %29 = vector.broadcast %cst_11 : f32 to vector<8x1xf32>
      %30 = arith.subf %29, %28 : vector<8x1xf32>
      %31 = arith.mulf %27, %30 : vector<8x1xf32>
      %32 = vector.broadcast %31 : vector<8x1xf32> to vector<8x32xf32>
      %33 = arith.mulf %24, %32 : vector<8x32xf32>
      %34 = tpu.iota {dimensions = array<i32: 1>} : vector<8x32xi32>
      %c0_12 = arith.constant 0 : index
      %c0_13 = arith.constant 0 : index
      %35 = vector.load %arg3[%c0_12, %c0_13] : memref<8x1xi32, #tpu.memory_space<vmem>>, vector<8x1xi32>
      %36 = vector.broadcast %35 : vector<8x1xi32> to vector<8x32xi32>
      %37 = arith.cmpi eq, %34, %36 : vector<8x32xi32>
      %38 = arith.extui %37 : vector<8x32xi1> to vector<8x32xi32>
      %39 = arith.sitofp %38 : vector<8x32xi32> to vector<8x32xf32>
      %40 = arith.subf %39, %33 : vector<8x32xf32>
      %41 = arith.mulf %40, %40 : vector<8x32xf32>
      %cst_14 = arith.constant dense<0.000000e+00> : vector<8xf32>
      %42 = vector.multi_reduction <add>, %41, %cst_14 [1] : vector<8x32xf32> to vector<8xf32>
      %43 = vector.shape_cast %42 : vector<8xf32> to vector<8x1xf32>
      %c0_15 = arith.constant 0 : index
      %c0_16 = arith.constant 0 : index
      %44 = vector.load %arg5[%c0_15, %c0_16] : memref<8x1xf32, #tpu.memory_space<vmem>>, vector<8x1xf32>
      %45 = vector.shape_cast %43 : vector<8x1xf32> to vector<1x8x1xf32>
      %cst_17 = arith.constant dense<0.000000e+00> : vector<8x1xf32>
      %46 = vector.multi_reduction <add>, %45, %cst_17 [0] : vector<1x8x1xf32> to vector<8x1xf32>
      %47 = arith.addf %44, %46 : vector<8x1xf32>
      %c0_18 = arith.constant 0 : index
      %c0_19 = arith.constant 0 : index
      %48 = vector.load %arg5[%c0_18, %c0_19] : memref<8x1xf32, #tpu.memory_space<vmem>>, vector<8x1xf32>
      tpu.vector_store %arg5[%c0_18, %c0_19], %47 {strides = array<i32>} : memref<8x1xf32, #tpu.memory_space<vmem>>, vector<8x1xf32>,
    } else {
    }
    %14 = arith.extui %11 : i1 to i32
    %c0_i32_6 = arith.constant 0 : i32
    %15 = arith.cmpi ne, %14, %c0_i32_6 : i32
    scf.if %15 {
      %c0 = arith.constant 0 : index
      %c0_9 = arith.constant 0 : index
      %19 = vector.load %arg2[%c0, %c0_9] : memref<8x32xf32, #tpu.memory_space<vmem>>, vector<8x32xf32>
      %20 = tpu.iota {dimensions = array<i32: 0>} : vector<8x1xi32>
      %21 = vector.broadcast %5 : i32 to vector<8x1xi32>
      %22 = arith.addi %21, %20 : vector<8x1xi32>
      %c8_i32_10 = arith.constant 8 : i32
      %23 = vector.broadcast %c8_i32_10 : i32 to vector<8x1xi32>
      %24 = arith.cmpi slt, %22, %23 : vector<8x1xi32>
      %cst = arith.constant 0.000000e+00 : f32
      %25 = vector.shape_cast %24 : vector<8x1xi1> to vector<8x1xi1>
      %26 = vector.broadcast %25 : vector<8x1xi1> to vector<8x32xi1>
      %27 = vector.broadcast %cst : f32 to vector<8x32xf32>
      %28 = arith.select %26, %19, %27 : vector<8x32xi1>, vector<8x32xf32>
      %cst_11 = arith.constant dense<0xFF800000> : vector<8xf32>
      %29 = vector.multi_reduction <maximumf>, %28, %cst_11 [1] : vector<8x32xf32> to vector<8xf32>
      %30 = vector.shape_cast %29 : vector<8xf32> to vector<8x1xf32>
      %31 = vector.broadcast %30 : vector<8x1xf32> to vector<8x32xf32>
      %32 = arith.subf %28, %31 : vector<8x32xf32>
      %33 = math.exp %32 : vector<8x32xf32>
      %cst_12 = arith.constant dense<0.000000e+00> : vector<8xf32>
      %34 = vector.multi_reduction <add>, %33, %cst_12 [1] : vector<8x32xf32> to vector<8xf32>
      %35 = vector.shape_cast %34 : vector<8xf32> to vector<8x1xf32>
      %36 = tpu.reciprocal %35 {approx = true} : vector<8x1xf32> -> vector<8x1xf32>
      %37 = arith.mulf %35, %36 : vector<8x1xf32>
      %cst_13 = arith.constant 2.000000e+00 : f32
      %38 = vector.broadcast %cst_13 : f32 to vector<8x1xf32>
      %39 = arith.subf %38, %37 : vector<8x1xf32>
      %40 = arith.mulf %36, %39 : vector<8x1xf32>
      %41 = vector.broadcast %40 : vector<8x1xf32> to vector<8x32xf32>
      %42 = arith.mulf %33, %41 : vector<8x32xf32>
      %43 = tpu.iota {dimensions = array<i32: 1>} : vector<8x32xi32>
      %c0_14 = arith.constant 0 : index
      %c0_15 = arith.constant 0 : index
      %44 = vector.load %arg3[%c0_14, %c0_15] : memref<8x1xi32, #tpu.memory_space<vmem>>, vector<8x1xi32>
      %45 = vector.broadcast %44 : vector<8x1xi32> to vector<8x32xi32>
      %46 = arith.cmpi eq, %43, %45 : vector<8x32xi32>
      %47 = arith.extui %46 : vector<8x32xi1> to vector<8x32xi32>
      %48 = arith.sitofp %47 : vector<8x32xi32> to vector<8x32xf32>
      %49 = arith.subf %48, %42 : vector<8x32xf32>
      %50 = arith.mulf %49, %49 : vector<8x32xf32>
      %cst_16 = arith.constant dense<0.000000e+00> : vector<8xf32>
      %51 = vector.multi_reduction <add>, %50, %cst_16 [1] : vector<8x32xf32> to vector<8xf32>
      %52 = vector.shape_cast %51 : vector<8xf32> to vector<8x1xf32>
      %cst_17 = arith.constant 0.000000e+00 : f32
      %53 = vector.broadcast %cst_17 : f32 to vector<8x1xf32>
      %54 = arith.select %24, %52, %53 : vector<8x1xi1>, vector<8x1xf32>
      %c0_18 = arith.constant 0 : index
      %c0_19 = arith.constant 0 : index
      %55 = vector.load %arg5[%c0_18, %c0_19] : memref<8x1xf32, #tpu.memory_space<vmem>>, vector<8x1xf32>
      %56 = vector.shape_cast %54 : vector<8x1xf32> to vector<1x8x1xf32>
      %cst_20 = arith.constant dense<0.000000e+00> : vector<8x1xf32>
      %57 = vector.multi_reduction <add>, %56, %cst_20 [0] : vector<1x8x1xf32> to vector<8x1xf32>
      %58 = arith.addf %55, %57 : vector<8x1xf32>
      %c0_21 = arith.constant 0 : index
      %c0_22 = arith.constant 0 : index
      %59 = vector.load %arg5[%c0_21, %c0_22] : memref<8x1xf32, #tpu.memory_space<vmem>>, vector<8x1xf32>
      tpu.vector_store %arg5[%c0_21, %c0_22], %58 {strides = array<i32>} : memref<8x1xf32, #tpu.memory_space<vmem>>, vector<8x1xf32>,
    } else {
    }
    %c0_i32_7 = arith.constant 0 : i32
    %16 = arith.cmpi eq, %arg1, %c0_i32_7 : i32
    %17 = arith.extui %16 : i1 to i32
    %c0_i32_8 = arith.constant 0 : i32
    %18 = arith.cmpi ne, %17, %c0_i32_8 : i32
    scf.if %18 {
      %c0 = arith.constant 0 : index
      %c0_9 = arith.constant 0 : index
      %19 = vector.load %arg5[%c0, %c0_9] : memref<8x1xf32, #tpu.memory_space<vmem>>, vector<8x1xf32>
      %c0_10 = arith.constant 0 : index
      %c0_11 = arith.constant 0 : index
      %20 = vector.load %arg4[%c0_10, %c0_11] : memref<8x1xf32, #tpu.memory_space<vmem>>, vector<8x1xf32>
      tpu.vector_store %arg4[%c0_10, %c0_11], %19 {strides = array<i32>} : memref<8x1xf32, #tpu.memory_space<vmem>>, vector<8x1xf32>,
    } else {
    }
    return
  }
  func.func @transform_0(%arg0: i32, %arg1: i32) -> (i32, i32) {
    %c1_i32 = arith.constant 1 : i32
    %0 = arith.muli %arg0, %c1_i32 : i32
    %1 = arith.addi %0, %arg1 : i32
    %c0_i32 = arith.constant 0 : i32
    %2 = arith.minsi %1, %c0_i32 : i32
    %c0_i32_0 = arith.constant 0 : i32
    %c0_i32_1 = arith.constant 0 : i32
    return %2, %c0_i32_0 : i32, i32
  }
  func.func @transform_1(%arg0: i32, %arg1: i32) -> (i32, i32) {
    %c1_i32 = arith.constant 1 : i32
    %0 = arith.muli %arg0, %c1_i32 : i32
    %1 = arith.addi %0, %arg1 : i32
    %c0_i32 = arith.constant 0 : i32
    %2 = arith.minsi %1, %c0_i32 : i32
    %c0_i32_0 = arith.constant 0 : i32
    %c0_i32_1 = arith.constant 0 : i32
    return %2, %c0_i32_0 : i32, i32
  }
  func.func @transform_2(%arg0: i32, %arg1: i32) -> (i32, i32) {
    %c0_i32 = arith.constant 0 : i32
    %c0_i32_0 = arith.constant 0 : i32
    return %arg0, %c0_i32 : i32, i32
  }
}

</mosaic_0001>

<llo_original>
// kernel: tpu_custom_call.1
$region0: #{tpu_custom_call.1}
  #allocation0 [shape = 'u32[]', space=smem, size = 0x4, offset = 0x4, fixed_abs, tag = 'smem constant byte address 0x4 - core index']
  #allocation1 [shape = 'u32[72,128]{1,0:T(1,128)}', space=vmem, size = 0x9000, scoped, tag = 'internal scratch']
  #allocation2 [shape = 'f32[8,1]{1,0:T(8,128)}', space=vmem, size = 0x1000, scoped, tag = 'scratch operand']
  %s0 = inlined_call_operand.vmem [shape: f32[8,32], index: 0, kind: input, shape index: {}]
  %s1 = inlined_call_operand.vmem [shape: s32[8,1], index: 1, kind: input, shape index: {}]
  %s2 = inlined_call_operand.vmem [shape: f32[8,1], index: 2, kind: output, shape index: {}]
  %s3 = sld [smem:[#allocation0]]
  $region34: #{tpu_custom_call.1} parent=0
    _
  %s5 = ssub.s32 1, %s3
  %s6 = scalar_select 0, %s5, %s3
  // Predicated region
  $region2: #{tpu_custom_call.1} parent=0 // pred_check
    _
  $region3: #{tpu_custom_call.1} parent=0 // pred_check_branch
    %8 = sbr.rel (0) target = $region5
  $region4: #{tpu_custom_call.1} parent=0 // pred_region
    %s9 = sadd.s32 0, 0
    %p10 = scmp.lt.s32.totalorder %s9, 0
    %s11 = scalar_select %p10, %s9, 0
    %p12 = scmp.lt.s32.totalorder %s11, 0
    %s13 = scalar_select %p12, %s11, 0
    %s14 = smul.addr %s13, 8
    %s15 = scalar_lea.vmem %s0, %s14
    %s16 = sadd.s32 0, 0
    %p17 = scmp.lt.s32.totalorder %s16, 0
    %s18 = scalar_select %p17, %s16, 0
  $region5: #{tpu_custom_call.1} parent=0 // pred_fallthru
    _
  // Predicated region
  $region6: #{tpu_custom_call.1} parent=0 // pred_check
    _
  $region7: #{tpu_custom_call.1} parent=0 // pred_check_branch
    %20 = sbr.rel (0) target = $region9
  $region8: #{tpu_custom_call.1} parent=0 // pred_region
    %s21 = sadd.s32 0, 0
    %p22 = scmp.lt.s32.totalorder %s21, 0
    %s23 = scalar_select %p22, %s21, 0
    %p24 = scmp.lt.s32.totalorder %s23, 0
    %s25 = scalar_select %p24, %s23, 0
    %s26 = smul.addr %s25, 8
    %s27 = scalar_lea.vmem %s1, %s26
    %s28 = sadd.s32 0, 0
    %p29 = scmp.lt.s32.totalorder %s28, 0
    %s30 = scalar_select %p29, %s28, 0
  $region9: #{tpu_custom_call.1} parent=0 // pred_fallthru
    _
  %s31 = sadd.s32 0, 0
  %p32 = scmp.lt.s32.totalorder %s31, 0
  %s33 = scalar_select %p32, %s31, 0
  %p34 = scmp.lt.s32.totalorder %s33, 0
  %s35 = scalar_select %p34, %s33, 0
  %s36 = smul.addr %s35, 8
  %s37 = scalar_lea.vmem %s0, %s36
  %s38 = sadd.s32 0, 0
  %p39 = scmp.lt.s32.totalorder %s38, 0
  %s40 = scalar_select %p39, %s38, 0
  %p41 = scmp.lt.s32.totalorder %s40, 0
  %s42 = scalar_select %p41, %s40, 0
  %s43 = smul.addr %s42, 8
  %s44 = scalar_lea.vmem %s1, %s43
  %s45 = sadd.s32 0, 0
  %p46 = scmp.lt.s32.totalorder %s45, 0
  %s47 = scalar_select %p46, %s45, 0
  %p48 = scmp.lt.s32.totalorder %s47, 0
  %s49 = scalar_select %p48, %s47, 0
  %s50 = smul.addr %s49, 8
  %s51 = scalar_lea.vmem %s0, %s50
  %s52 = sadd.s32 0, 0
  %p53 = scmp.lt.s32.totalorder %s52, 0
  %s54 = scalar_select %p53, %s52, 0
  %s55 = sadd.s32 0, 0
  %p56 = scmp.lt.s32.totalorder %s55, 0
  %s57 = scalar_select %p56, %s55, 0
  %p58 = scmp.lt.s32.totalorder %s57, 0
  %s59 = scalar_select %p58, %s57, 0
  %s60 = smul.addr %s59, 8
  %s61 = scalar_lea.vmem %s1, %s60
  %s62 = sadd.s32 0, 0
  %p63 = scmp.lt.s32.totalorder %s62, 0
  %s64 = scalar_select %p63, %s62, 0
  %p65 = scmp.eq.s32.totalorder 0, 0
  // Predicated region
  $region10: #{tpu_custom_call.1} parent=0 // pred_check
    %p66 = pneg %p65
  $region11: #{tpu_custom_call.1} parent=0 // pred_check_branch
    %68 = sbr.rel (%p66) target = $region13
  $region12: #{tpu_custom_call.1} parent=0 // pred_region
    %vm69 = vcmask 7168
    %70 = vst.msk [vmem:[#allocation2] sm:$0xff] %vm69, 0.0
  $region13: #{tpu_custom_call.1} parent=0 // pred_fallthru
    _
  %s71 = sadd.s32 0, 0
  %s72 = smul.u32 %s71, 8
  %s73 = sadd.s32 %s72, 8
  %p74 = scmp.le.s32.totalorder %s73, 8
  %p75 = scmp.gt.s32.totalorder %s73, 8
  %p76 = scmp.lt.s32.totalorder %s72, 8
  %p77 = pnand %p75, %p76
  %p78 = pneg %p77
  // Predicated region
  $region14: #{tpu_custom_call.1} parent=0 // pred_check
    %p79 = pneg %p74
  $region15: #{tpu_custom_call.1} parent=0 // pred_check_branch
    %81 = sbr.rel (%p79) target = $region17
  $region16: #{tpu_custom_call.1} parent=0 // pred_region
    %v82 = vld [vmem:[%s51] sm:$0xff]
    %vm83 = vcmask 261120
    %v84 = vsel %vm83, %v82, -inf
    %85 = vmax.xlane.f32.xlu0 %v84
    %v86 = vpop.xlane.xlu0 %85
    %v87 = vsub.f32 %v82, %v86
    %v88 = vmul.f32 %v87, 1.442695
    %v89 = vpow.pop %v88
    %v90 = vsel %vm83, %v89, 0.0
    %91 = vadd.xlane.f32.xlu0 %v90
    %v92 = vpop.xlane.xlu0 %91
    %v93 = vrcp.pop %v92
    %v94 = vmul.f32 %v92, %v93
    %v95 = vsub.f32 2.0, %v94
    %v96 = vmul.f32 %v93, %v95
    %v97 = vmul.f32 %v89, %v96
    %v98 = vlaneseq
    %v99 = vand.u32 %v98, 127
    %v100 = vld [vmem:[%s61] sm:$0xff]
    %101 = vset.pattern.permute.xlu0 0
    %102 = vperm.xlu0 %101, %v100
    %v103 = vpop.permute.xlu0 %102
    %vm104 = vcmp.eq.s32.totalorder %v99, %v103
    %v105 = vsel %vm104, 1, 0
    %v106 = vcvt.s32.f32 %v105
    %v107 = vsub.f32 %v106, %v97
    %v108 = vmul.f32 %v107, %v107
    %v109 = vsel %vm83, %v108, 0.0
    %110 = vadd.xlane.f32.xlu0 %v109
    %v111 = vpop.xlane.xlu0 %110
    %v112 = vld [vmem:[#allocation2] sm:$0xff]
    %v113 = vadd.f32 %v111, 0.0
    %v114 = vadd.f32 %v112, %v113
    %vm115 = vcmask 7168
    %116 = vst.msk [vmem:[#allocation2] sm:$0xff] %vm115, %v114
  $region17: #{tpu_custom_call.1} parent=0 // pred_fallthru
    _
  // Predicated region
  $region18: #{tpu_custom_call.1} parent=0 // pred_check
    _
  $region19: #{tpu_custom_call.1} parent=0 // pred_check_branch
    %118 = sbr.rel (%p77) target = $region21
  $region20: #{tpu_custom_call.1} parent=0 // pred_region
    %v119 = vld [vmem:[%s51] sm:$0xff]
    %v120 = vlaneseq
    %v121 = vshrl.u32 %v120, 7
    %v122 = vstv %s72
    %v123 = vadd.s32 %v122, %v121
    %vm124 = vcmp.lt.s32.totalorder %v123, 8
    %v125 = vsel %vm124, 1, 0
    %vm126 = vcmp.eq.s32.totalorder %v125, 1
    %v127 = vsel %vm126, %v119, 0.0
    %vm128 = vcmask 261120
    %v129 = vsel %vm128, %v127, -inf
    %130 = vmax.xlane.f32.xlu0 %v129
    %v131 = vpop.xlane.xlu0 %130
    %v132 = vsub.f32 %v127, %v131
    %v133 = vmul.f32 %v132, 1.442695
    %v134 = vpow.pop %v133
    %v135 = vsel %vm128, %v134, 0.0
    %136 = vadd.xlane.f32.xlu0 %v135
    %v137 = vpop.xlane.xlu0 %136
    %v138 = vrcp.pop %v137
    %v139 = vmul.f32 %v137, %v138
    %v140 = vsub.f32 2.0, %v139
    %v141 = vmul.f32 %v138, %v140
    %v142 = vmul.f32 %v134, %v141
    %v143 = vlaneseq
    %v144 = vand.u32 %v143, 127
    %v145 = vld [vmem:[%s61] sm:$0xff]
    %146 = vset.pattern.permute.xlu0 0
    %147 = vperm.xlu0 %146, %v145
    %v148 = vpop.permute.xlu0 %147
    %vm149 = vcmp.eq.s32.totalorder %v144, %v148
    %v150 = vsel %vm149, 1, 0
    %v151 = vcvt.s32.f32 %v150
    %v152 = vsub.f32 %v151, %v142
    %v153 = vmul.f32 %v152, %v152
    %v154 = vsel %vm128, %v153, 0.0
    %155 = vadd.xlane.f32.xlu0 %v154
    %v156 = vpop.xlane.xlu0 %155
    %v157 = vsel %vm124, %v156, 0.0
    %v158 = vld [vmem:[#allocation2] sm:$0xff]
    %v159 = vadd.f32 %v157, 0.0
    %v160 = vadd.f32 %v158, %v159
    %vm161 = vcmask 7168
    %162 = vst.msk [vmem:[#allocation2] sm:$0xff] %vm161, %v160
  $region21: #{tpu_custom_call.1} parent=0 // pred_fallthru
    _
  // Predicated region
  $region22: #{tpu_custom_call.1} parent=0 // pred_check
    %p163 = pneg %p65
  $region23: #{tpu_custom_call.1} parent=0 // pred_check_branch
    %165 = sbr.rel (%p163) target = $region25
  $region24: #{tpu_custom_call.1} parent=0 // pred_region
    %v166 = vld [vmem:[#allocation2] sm:$0xff]
    %vm167 = vcmask 7168
    %168 = vst.msk [vmem:[%s2] sm:$0xff] %vm167, %v166
  $region25: #{tpu_custom_call.1} parent=0 // pred_fallthru
    _
  // Predicated region
  $region26: #{tpu_custom_call.1} parent=0 // pred_check
    _
  $region27: #{tpu_custom_call.1} parent=0 // pred_check_branch
    %170 = sbr.rel (0) target = $region29
  $region28: #{tpu_custom_call.1} parent=0 // pred_region
    _
  $region29: #{tpu_custom_call.1} parent=0 // pred_fallthru
    _
  // Predicated region
  $region30: #{tpu_custom_call.1} parent=0 // pred_check
    _
  $region31: #{tpu_custom_call.1} parent=0 // pred_check_branch
    %172 = sbr.rel (0) target = $region33
  $region32: #{tpu_custom_call.1} parent=0 // pred_region
    _
  $region33: #{tpu_custom_call.1} parent=0 // pred_fallthru
    _

</llo_original>
